<compile_context>
chip_gen: v5e
topology: v5e:2x2
jax: 0.10.0
libtpu: 0.0.40
codegen_flags: <defaults>
</compile_context>

<pallas_src>
import functools

import jax
import jax.numpy as jnp
from jax.experimental import pallas as pl
from jax.experimental.pallas import tpu as pltpu

_OUT_W = 128  # lane-dense output slab width (cols 0,1,2 used)


def _ensemble_kernel(x_ref, wsel_ref, bias_ref, w2_ref, b2_ref, out_ref, *,
                     n_trees):
    """One grid step == one batch tile fully resident in VMEM."""
    x = x_ref[...]                                             # (TB, F) f32

    # --- fused first layer: x @ [sel | w1]  (single MXU matmul, bf16 in,
    #     f32 accumulate), then one fused bias add of [-thr | b1].
    hs = jnp.dot(x.astype(jnp.bfloat16), wsel_ref[...],
                 preferred_element_type=jnp.float32)           # (TB, T+H)
    hs = hs + bias_ref[...]                                    # (TB, T+H)

    # --- random-forest surrogate: stump votes live in lanes [0, T)
    votes = (hs[:, :n_trees] > 0.0).astype(jnp.float32)        # (TB, T)
    frac = jnp.mean(votes, axis=-1, keepdims=True)             # (TB, 1) XLU
    p_rf = (frac >= 0.5).astype(jnp.float32)                   # hard labels

    # --- neural network tail: lanes [T, T+H) are the hidden pre-activations
    h = jnp.maximum(hs[:, n_trees:], 0.0)                      # (TB, H) ReLU
    # width-1 second layer as VPU mul + XLU lane-reduce
    logit = jnp.sum(h * w2_ref[...], axis=-1, keepdims=True)   # (TB, 1)
    logit = logit + b2_ref[0, 0]                               # SMEM scalar
    p_nn = jax.nn.sigmoid(logit)                               # (TB, 1) EUP

    # --- ensemble mean over [nn, nn, nn, rf]
    avg = (3.0 * p_nn + p_rf) * 0.25                           # (TB, 1)

    # single lane-dense store: col0=avg, col1=p_nn, col2=p_rf, rest zero.
    lane = jax.lax.broadcasted_iota(jnp.int32, out_ref.shape, 1)
    out_ref[...] = (jnp.where(lane == 0, avg, 0.0)
                    + jnp.where(lane == 1, p_nn, 0.0)
                    + jnp.where(lane == 2, p_rf, 0.0))


@jax.jit
def ensemble_forward(x, w1, b1, w2, b2, sel, thr):
    """Returns (avg_prediction (B,), {1:.., 2:.., 3:.., 4:..}) like the module."""
    assert x.ndim != 1, "ensemble: x.dim() == 1. No BatchNorm dimension"
    B, F = x.shape
    H = w1.shape[1]
    T = sel.shape[1]

    # batch tile: keep sublanes a multiple of 8 (f32); shard big batches over
    # a parallel grid axis (megacore on v7x).
    if B >= 128:
        tile_b = 128
    else:
        tile_b = max(8, ((B + 7) // 8) * 8)
    b_pad = pl.cdiv(B, tile_b) * tile_b
    x_p = x if b_pad == B else jnp.pad(x, ((0, b_pad - B), (0, 0)))
    n_tiles = b_pad // tile_b

    # fused operands (layout plumbing only; stumps first so the split at T=128
    # lanes is vreg-aligned).  bf16 weights halve HBM->VMEM bytes and hit the
    # native MXU path on v6e/v7x.
    wsel = jnp.concatenate([sel, w1], axis=1).astype(jnp.bfloat16)   # (F, T+H)
    bias = jnp.concatenate([-thr, b1], axis=1).astype(jnp.float32)   # (1, T+H)
    w2_row = jnp.reshape(w2, (1, H)).astype(jnp.float32)             # (1, H)
    b2_s = jnp.reshape(b2, (1, 1)).astype(jnp.float32)               # (1, 1)

    kernel = functools.partial(_ensemble_kernel, n_trees=T)

    out = pl.pallas_call(
        kernel,
        out_shape=jax.ShapeDtypeStruct((b_pad, _OUT_W), jnp.float32),
        grid_spec=pltpu.PrefetchScalarGridSpec(
            num_scalar_prefetch=0,
            grid=(n_tiles,),
            in_specs=[
                pl.BlockSpec((tile_b, F), lambda i: (i, 0)),        # x (tiled)
                pl.BlockSpec((F, T + H), lambda i: (0, 0)),         # [sel|w1]
                pl.BlockSpec((1, T + H), lambda i: (0, 0)),         # [-thr|b1]
                pl.BlockSpec((1, H), lambda i: (0, 0)),             # w2 row
                pl.BlockSpec(memory_space=pltpu.MemorySpace.SMEM),  # b2 scalar
            ],
            out_specs=pl.BlockSpec((tile_b, _OUT_W), lambda i: (i, 0)),
        ),
        compiler_params=pltpu.CompilerParams(
            dimension_semantics=("parallel",)),
    )(x_p, wsel, bias, w2_row, b2_s)

    # cheap wrapper-side slices of the fused lane-dense slab
    avg = out[:B, 0]     # (B,)
    p_nn = out[:B, 1]    # (B,)  .squeeze() semantics of the PyTorch forward
    p_rf = out[:B, 2]    # (B,)

    model_predictions = {1: p_nn, 2: p_nn, 3: p_nn, 4: p_rf}
    return avg, model_predictions


def make_params(key, n_features=32, hidden=64, n_trees=128):
    """Deterministic synthetic parameters standing in for checkpoint loads."""
    k1, k2, k3, k4, k5 = jax.random.split(key, 5)
    w1 = (jax.random.normal(k1, (n_features, hidden), jnp.float32)
          / jnp.sqrt(jnp.float32(n_features)))
    b1 = jax.random.normal(k2, (1, hidden), jnp.float32) * 0.01
    w2 = (jax.random.normal(k3, (hidden, 1), jnp.float32)
          / jnp.sqrt(jnp.float32(hidden)))
    b2 = jnp.zeros((1, 1), jnp.float32)

    # stump forest: tree t splits on feature (t % n_features) at a random thr
    feat_idx = jnp.arange(n_trees) % n_features
    sel = jax.nn.one_hot(feat_idx, n_features, dtype=jnp.float32).T   # (F, T)
    thr = jax.random.normal(k4, (1, n_trees), jnp.float32) * 0.5

    return w1, b1, w2, b2, sel, thr, k5


if __name__ == "__main__":
    key = jax.random.PRNGKey(0)
    B, F, H, T = 8, 32, 64, 128

    w1, b1, w2, b2, sel, thr, kx = make_params(key, n_features=F,
                                               hidden=H, n_trees=T)
    x = jax.random.normal(kx, (B, F), jnp.float32)   # layout: (batch, features)

    avg, model_preds = ensemble_forward(x, w1, b1, w2, b2, sel, thr)
    jax.block_until_ready(avg)
    for v in model_preds.values():
        jax.block_until_ready(v)

    # 1) ensemble mean must equal mean of the stacked per-model outputs
    stacked = jnp.stack([model_preds[1], model_preds[2],
                         model_preds[3], model_preds[4]], axis=0)
    assert jnp.allclose(avg, jnp.mean(stacked, axis=0), atol=1e-6)
    assert avg.shape == (B,)
    assert model_preds[4].shape == (B,)

    # 2) pure-JAX reference for the neural-network branch (loose tol: kernel
    #    uses bf16 MXU operands with f32 accumulation)
    p_nn_ref = jax.nn.sigmoid(
        jnp.maximum(x @ w1 + b1, 0.0) @ w2 + b2[0, 0]).squeeze(-1)
    assert jnp.allclose(model_preds[1], p_nn_ref, atol=5e-2)

    # 3) rf surrogate emits hard 0/1 labels like rfc.predict()
    assert bool(jnp.all((model_preds[4] == 0.0) | (model_preds[4] == 1.0)))

    print("KERNEL_OK")
</pallas_src>

<mosaic_0001>
module attributes {stable_mosaic.version = 11 : i64} {
  func.func @_ensemble_kernel(%arg0: i32, %arg1: memref<8x32xf32, #tpu.memory_space<vmem>>, %arg2: memref<32x192xbf16, #tpu.memory_space<vmem>>, %arg3: memref<1x192xf32, #tpu.memory_space<vmem>>, %arg4: memref<1x64xf32, #tpu.memory_space<vmem>>, %arg5: memref<1x1xf32, #tpu.memory_space<smem>>, %arg6: memref<8x128xf32, #tpu.memory_space<vmem>>) attributes {dimension_semantics = [#tpu.dimension_semantics<parallel>], iteration_bounds = array<i64: 1>, scalar_prefetch = 0 : i64, scratch_operands = 0 : i64, tpu.core_type = #tpu.core_type<tc>, window_params = [{transform_indices = @transform_0, window_bounds = array<i64: 8, 32>}, {pipeline_mode = #tpu.pipeline_mode<synchronous>, transform_indices = @transform_1, window_bounds = array<i64: 32, 192>}, {pipeline_mode = #tpu.pipeline_mode<synchronous>, transform_indices = @transform_2, window_bounds = array<i64: 1, 192>}, {pipeline_mode = #tpu.pipeline_mode<synchronous>, transform_indices = @transform_3, window_bounds = array<i64: 1, 64>}, {transform_indices = @transform_4, window_bounds = array<i64: 1, 1>}, {transform_indices = @transform_5, window_bounds = array<i64: 8, 128>}]} {
    %c0 = arith.constant 0 : index
    %c0_0 = arith.constant 0 : index
    %0 = vector.load %arg1[%c0, %c0_0] : memref<8x32xf32, #tpu.memory_space<vmem>>, vector<8x32xf32>
    %1 = arith.truncf %0 : vector<8x32xf32> to vector<8x32xbf16>
    %c0_1 = arith.constant 0 : index
    %c0_2 = arith.constant 0 : index
    %2 = vector.load %arg2[%c0_1, %c0_2] : memref<32x192xbf16, #tpu.memory_space<vmem>>, vector<32x192xbf16>
    %cst = arith.constant dense<0.000000e+00> : vector<8x192xf32>
    %3 = tpu.matmul %1, %2, %cst {dimension_numbers = #tpu.dot_dimension_numbers<[1], [0], [0], [1], [0, 0, 1, 1], [], []>} : vector<8x32xbf16>, vector<32x192xbf16>, vector<8x192xf32> -> vector<8x192xf32>
    %c0_3 = arith.constant 0 : index
    %c0_4 = arith.constant 0 : index
    %4 = vector.load %arg3[%c0_3, %c0_4] : memref<1x192xf32, #tpu.memory_space<vmem>>, vector<1x192xf32>
    %5 = vector.broadcast %4 : vector<1x192xf32> to vector<8x192xf32>
    %6 = arith.addf %3, %5 : vector<8x192xf32>
    %7 = vector.extract_strided_slice %6 {offsets = [0, 0], sizes = [8, 128], strides = [1, 1]} : vector<8x192xf32> to vector<8x128xf32>
    %cst_5 = arith.constant 0.000000e+00 : f32
    %8 = vector.broadcast %cst_5 : f32 to vector<8x128xf32>
    %9 = arith.cmpf ogt, %7, %8 : vector<8x128xf32>
    %10 = arith.extui %9 : vector<8x128xi1> to vector<8x128xi32>
    %11 = arith.sitofp %10 : vector<8x128xi32> to vector<8x128xf32>
    %cst_6 = arith.constant dense<0.000000e+00> : vector<8xf32>
    %12 = vector.multi_reduction <add>, %11, %cst_6 [1] : vector<8x128xf32> to vector<8xf32>
    %13 = vector.shape_cast %12 : vector<8xf32> to vector<8x1xf32>
    %cst_7 = arith.constant 1.280000e+02 : f32
    %14 = vector.broadcast %cst_7 : f32 to vector<8x1xf32>
    %15 = arith.divf %13, %14 : vector<8x1xf32>
    %cst_8 = arith.constant 5.000000e-01 : f32
    %16 = vector.broadcast %cst_8 : f32 to vector<8x1xf32>
    %17 = arith.cmpf oge, %15, %16 : vector<8x1xf32>
    %18 = arith.extui %17 : vector<8x1xi1> to vector<8x1xi32>
    %19 = arith.sitofp %18 : vector<8x1xi32> to vector<8x1xf32>
    %20 = vector.extract_strided_slice %6 {offsets = [0, 128], sizes = [8, 64], strides = [1, 1]} : vector<8x192xf32> to vector<8x64xf32>
    %cst_9 = arith.constant 0.000000e+00 : f32
    %21 = vector.broadcast %cst_9 : f32 to vector<8x64xf32>
    %22 = arith.maximumf %20, %21 : vector<8x64xf32>
    %c0_10 = arith.constant 0 : index
    %c0_11 = arith.constant 0 : index
    %23 = vector.load %arg4[%c0_10, %c0_11] : memref<1x64xf32, #tpu.memory_space<vmem>>, vector<1x64xf32>
    %24 = vector.broadcast %23 : vector<1x64xf32> to vector<8x64xf32>
    %25 = arith.mulf %22, %24 : vector<8x64xf32>
    %cst_12 = arith.constant dense<0.000000e+00> : vector<8xf32>
    %26 = vector.multi_reduction <add>, %25, %cst_12 [1] : vector<8x64xf32> to vector<8xf32>
    %27 = vector.shape_cast %26 : vector<8xf32> to vector<8x1xf32>
    %c0_13 = arith.constant 0 : index
    %c0_14 = arith.constant 0 : index
    %28 = memref.load %arg5[%c0_13, %c0_14] : memref<1x1xf32, #tpu.memory_space<smem>>
    %29 = vector.broadcast %28 : f32 to vector<8x1xf32>
    %30 = arith.addf %27, %29 : vector<8x1xf32>
    %31 = arith.negf %30 : vector<8x1xf32>
    %32 = math.exp %31 : vector<8x1xf32>
    %cst_15 = arith.constant 1.000000e+00 : f32
    %33 = vector.broadcast %cst_15 : f32 to vector<8x1xf32>
    %34 = arith.addf %33, %32 : vector<8x1xf32>
    %35 = arith.divf %33, %34 : vector<8x1xf32>
    %cst_16 = arith.constant 3.000000e+00 : f32
    %36 = vector.broadcast %cst_16 : f32 to vector<8x1xf32>
    %37 = arith.mulf %36, %35 : vector<8x1xf32>
    %38 = arith.addf %37, %19 : vector<8x1xf32>
    %cst_17 = arith.constant 2.500000e-01 : f32
    %39 = vector.broadcast %cst_17 : f32 to vector<8x1xf32>
    %40 = arith.mulf %38, %39 : vector<8x1xf32>
    %41 = tpu.iota {dimensions = array<i32: 1>} : vector<8x128xi32>
    %c0_i32 = arith.constant 0 : i32
    %42 = vector.broadcast %c0_i32 : i32 to vector<8x128xi32>
    %43 = arith.cmpi eq, %41, %42 : vector<8x128xi32>
    %cst_18 = arith.constant 0.000000e+00 : f32
    %44 = vector.shape_cast %40 : vector<8x1xf32> to vector<8x1xf32>
    %45 = vector.broadcast %44 : vector<8x1xf32> to vector<8x128xf32>
    %46 = vector.broadcast %cst_18 : f32 to vector<8x128xf32>
    %47 = arith.select %43, %45, %46 : vector<8x128xi1>, vector<8x128xf32>
    %c1_i32 = arith.constant 1 : i32
    %48 = vector.broadcast %c1_i32 : i32 to vector<8x128xi32>
    %49 = arith.cmpi eq, %41, %48 : vector<8x128xi32>
    %cst_19 = arith.constant 0.000000e+00 : f32
    %50 = vector.shape_cast %35 : vector<8x1xf32> to vector<8x1xf32>
    %51 = vector.broadcast %50 : vector<8x1xf32> to vector<8x128xf32>
    %52 = vector.broadcast %cst_19 : f32 to vector<8x128xf32>
    %53 = arith.select %49, %51, %52 : vector<8x128xi1>, vector<8x128xf32>
    %54 = arith.addf %47, %53 : vector<8x128xf32>
    %c2_i32 = arith.constant 2 : i32
    %55 = vector.broadcast %c2_i32 : i32 to vector<8x128xi32>
    %56 = arith.cmpi eq, %41, %55 : vector<8x128xi32>
    %cst_20 = arith.constant 0.000000e+00 : f32
    %57 = vector.shape_cast %19 : vector<8x1xf32> to vector<8x1xf32>
    %58 = vector.broadcast %57 : vector<8x1xf32> to vector<8x128xf32>
    %59 = vector.broadcast %cst_20 : f32 to vector<8x128xf32>
    %60 = arith.select %56, %58, %59 : vector<8x128xi1>, vector<8x128xf32>
    %61 = arith.addf %54, %60 : vector<8x128xf32>
    %c0_21 = arith.constant 0 : index
    %c0_22 = arith.constant 0 : index
    %62 = vector.load %arg6[%c0_21, %c0_22] : memref<8x128xf32, #tpu.memory_space<vmem>>, vector<8x128xf32>
    tpu.vector_store %arg6[%c0_21, %c0_22], %61 {strides = array<i32>} : memref<8x128xf32, #tpu.memory_space<vmem>>, vector<8x128xf32>,
    return
  }
  func.func @transform_0(%arg0: i32) -> (i32, i32) {
    %c0_i32 = arith.constant 0 : i32
    %c0_i32_0 = arith.constant 0 : i32
    return %arg0, %c0_i32 : i32, i32
  }
  func.func @transform_1(%arg0: i32) -> (i32, i32) {
    %c0_i32 = arith.constant 0 : i32
    %c0_i32_0 = arith.constant 0 : i32
    %c0_i32_1 = arith.constant 0 : i32
    return %c0_i32, %c0_i32_0 : i32, i32
  }
  func.func @transform_2(%arg0: i32) -> (i32, i32) {
    %c0_i32 = arith.constant 0 : i32
    %c0_i32_0 = arith.constant 0 : i32
    %c0_i32_1 = arith.constant 0 : i32
    return %c0_i32, %c0_i32_0 : i32, i32
  }
  func.func @transform_3(%arg0: i32) -> (i32, i32) {
    %c0_i32 = arith.constant 0 : i32
    %c0_i32_0 = arith.constant 0 : i32
    %c0_i32_1 = arith.constant 0 : i32
    return %c0_i32, %c0_i32_0 : i32, i32
  }
  func.func @transform_4(%arg0: i32) -> (i32, i32) {
    %c0_i32 = arith.constant 0 : i32
    %c0_i32_0 = arith.constant 0 : i32
    %c0_i32_1 = arith.constant 0 : i32
    return %c0_i32, %c0_i32_0 : i32, i32
  }
  func.func @transform_5(%arg0: i32) -> (i32, i32) {
    %c0_i32 = arith.constant 0 : i32
    %c0_i32_0 = arith.constant 0 : i32
    return %arg0, %c0_i32 : i32, i32
  }
}

</mosaic_0001>

<llo_original>
// kernel: neg.1
$region0: #{neg.1}
  #allocation0 [shape = 's32[1]{0}', space=sflag, size = 0x4, scoped, tag = 'scoped memory for neg.1']
  %s0 = inlined_call_operand.vmem [shape: f32[1,128], index: 0, kind: input, shape index: {}]
  %s1 = inlined_call_operand.vmem [shape: f32[1,128], index: 1, kind: output, shape index: {}]
  %v2 = vld [vmem:[%s0] sm:$0x1]
  %3 = xla_tuple %v2
  %4 = xla_tuple %3
  %v5 = vxor.u32 %v2, 2147483648
  %6 = xla_tuple %v5
  %7 = vst [vmem:[%s1] sm:$0x1] %v5

// kernel: ensemble_forward.1
$region0: #{ensemble_forward.1}
  #allocation0 [shape = 'u32[]', space=smem, size = 0x4, offset = 0x4, fixed_abs, tag = 'smem constant byte address 0x4 - core index']
  #allocation1 [shape = 'u32[72,128]{1,0:T(1,128)}', space=vmem, size = 0x9000, scoped, tag = 'internal scratch']
  #allocation2 [shape = 'f32[1,1]{1,0:T(1,128)S(6)}', space=smem, size = 0x200, scoped, tag = 'scoped memory for ensemble_forward.1']
  %s0 = inlined_call_operand.vmem [shape: f32[8,32], index: 0, kind: input, shape index: {}]
  %s1 = inlined_call_operand.vmem [shape: bf16[32,192], index: 1, kind: input, shape index: {}]
  %s2 = inlined_call_operand.vmem [shape: f32[1,192], index: 2, kind: input, shape index: {}]
  %s3 = inlined_call_operand.vmem [shape: f32[1,64], index: 3, kind: input, shape index: {}]
  %s4 = inlined_call_operand.<no memory space> [shape: f32[1,1], index: 4, kind: input, shape index: {}]
  %s5 = inlined_call_operand.vmem [shape: f32[8,128], index: 5, kind: output, shape index: {}]
  %s6 = sld [smem:[#allocation0]]
  $region30: #{ensemble_forward.1} parent=0
    _
  %s8 = ssub.s32 1, %s6
  %s9 = scalar_select 0, %s8, %s6
  %10 = sst [smem:[#allocation2]] %s4
  // Predicated region
  $region2: #{ensemble_forward.1} parent=0 // pred_check
    _
  $region3: #{ensemble_forward.1} parent=0 // pred_check_branch
    %12 = sbr.rel (0) target = $region5
  $region4: #{ensemble_forward.1} parent=0 // pred_region
    _
  $region5: #{ensemble_forward.1} parent=0 // pred_fallthru
    _
  // Predicated region
  $region6: #{ensemble_forward.1} parent=0 // pred_check
    _
  $region7: #{ensemble_forward.1} parent=0 // pred_check_branch
    %14 = sbr.rel (0) target = $region9
  $region8: #{ensemble_forward.1} parent=0 // pred_region
    _
  $region9: #{ensemble_forward.1} parent=0 // pred_fallthru
    _
  // Predicated region
  $region10: #{ensemble_forward.1} parent=0 // pred_check
    _
  $region11: #{ensemble_forward.1} parent=0 // pred_check_branch
    %16 = sbr.rel (0) target = $region13
  $region12: #{ensemble_forward.1} parent=0 // pred_region
    _
  $region13: #{ensemble_forward.1} parent=0 // pred_fallthru
    _
  // Predicated region
  $region14: #{ensemble_forward.1} parent=0 // pred_check
    _
  $region15: #{ensemble_forward.1} parent=0 // pred_check_branch
    %18 = sbr.rel (0) target = $region17
  $region16: #{ensemble_forward.1} parent=0 // pred_region
    _
  $region17: #{ensemble_forward.1} parent=0 // pred_fallthru
    _
  // Predicated region
  $region18: #{ensemble_forward.1} parent=0 // pred_check
    _
  $region19: #{ensemble_forward.1} parent=0 // pred_check_branch
    %20 = sbr.rel (0) target = $region21
  $region20: #{ensemble_forward.1} parent=0 // pred_region
    _
  $region21: #{ensemble_forward.1} parent=0 // pred_fallthru
    _
  %v22 = vld [vmem:[%s0] sm:$0xff]
  %v23 = vpack.c.bf16 %v22, %v22
  %v24 = vld [vmem:[%s1] sm:$0xff]
  %v25 = vld [vmem:[%s1 + $0x8] sm:$0xff]
  %v26 = vld [vmem:[%s1 + $0x10] sm:$0xff]
  %v27 = vld [vmem:[%s1 + $0x18] sm:$0xff]
  %v28 = vld [vmem:[%s2] sm:$0x3]
  %v30 = vperm.slane %v28, 0
  %v31 = vperm.slane %v28, 1
  %v38 = vunpack.c.l.b16 %v24
  %v39 = vunpack.c.h.b16 %v24
  %v40 = vunpack.c.l.b16 %v25
  %v41 = vunpack.c.h.b16 %v25
  %v42 = vunpack.c.l.b16 %v26
  %v43 = vunpack.c.h.b16 %v26
  %v44 = vunpack.c.l.b16 %v27
  %v45 = vunpack.c.h.b16 %v27
  %v46 = vpack.c.b16 %v40, %v38
  %v47 = vpack.c.b16 %v41, %v39
  %v48 = vpack.c.b16 %v44, %v42
  %v49 = vpack.c.b16 %v45, %v43
  %vm54 = vcmask 261120
  %v56 = vsel %vm54, %v23, 0
  %58 = vmatpush.bf16.msra.mxu0 0
  %59 = vmatpush.bf16.msra.mxu0 0
  %60 = vmatpush.bf16.msra.mxu0 0
  %61 = vmatpush.bf16.msra.mxu0 0
  %62 = vmatpush.bf16.msra.mxu0 0
  %63 = vmatpush.bf16.msra.mxu0 0
  %64 = vmatpush.bf16.msra.mxu0 %v48
  %65 = vmatpush.bf16.msra.mxu0 %v46
  %66 = vmatmul.bf16.gmra.mxu0 %v56
  %v67 = vpop.f32.mrf.mxu0
  %v68 = vadd.f32 %v30, %v67
  %v69 = vpop.f32.mrf.mxu0
  %70 = vdwg.mxu0
  %71 = vmatpush.bf16.msra.mxu0 0
  %72 = vmatpush.bf16.msra.mxu0 0
  %73 = vmatpush.bf16.msra.mxu0 0
  %74 = vmatpush.bf16.msra.mxu0 0
  %75 = vmatpush.bf16.msra.mxu0 0
  %76 = vmatpush.bf16.msra.mxu0 0
  %77 = vmatpush.bf16.msra.mxu0 %v49
  %78 = vmatpush.bf16.msra.mxu0 %v47
  %79 = vmatmul.bf16.gmra.mxu0 %v56
  %v80 = vpop.f32.mrf.mxu0
  %v81 = vadd.f32 %v31, %v80
  %v82 = vpop.f32.mrf.mxu0
  %83 = vdwg.mxu0
  %vm84 = vcmp.gt.f32.partialorder %v68, 0.0
  %v85 = vsel %vm84, 1, 0
  %v86 = vcvt.s32.f32 %v85
  %87 = vadd.xlane.f32.xlu0 %v86
  %v88 = vpop.xlane.xlu0 %87
  %v89 = vrcp.pop 128.0
  %v90 = vmul.f32 128.0, %v89
  %v91 = vsub.f32 1.0, %v90
  %v92 = vmul.f32 %v89, %v91
  %v93 = vadd.f32 %v89, %v92
  %vm94 = vweird.f32 %v89
  %v95 = vsel %vm94, %v89, %v93
  %v96 = vmul.f32 %v88, %v95
  %vm97 = vcmp.ge.f32.partialorder %v96, 0.5
  %v98 = vsel %vm97, 1, 0
  %v99 = vcvt.s32.f32 %v98
  %v100 = vmax.f32 %v81, 0.0
  %v101 = vld [vmem:[%s3] sm:$0x1]
  %v103 = vperm.slane %v101, 0
  %v105 = vmul.f32 %v100, %v103
  %vm106 = vcmask 523264
  %v107 = vsel %vm106, %v105, 0.0
  %108 = vadd.xlane.f32.xlu0 %v107
  %v109 = vpop.xlane.xlu0 %108
  %s110 = sld [smem:[#allocation2]]
  %v111 = vstv %s110
  %v112 = vadd.f32 %v109, %v111
  %v113 = vxor.u32 %v112, 2147483648
  %v114 = vmul.f32 %v113, 1.442695
  %v115 = vpow.pop %v114
  %v116 = vadd.f32 %v115, 1.0
  %v117 = vrcp.pop %v116
  %v118 = vmul.f32 %v116, %v117
  %v119 = vsub.f32 1.0, %v118
  %v120 = vmul.f32 %v117, %v119
  %v121 = vadd.f32 %v117, %v120
  %vm122 = vweird.f32 %v116
  %vm123 = vweird.f32 %v117
  %vm124 = vmor %vm122, %vm123
  %v125 = vsel %vm124, %v117, %v121
  %v126 = vand.u32 2147483647, %v116
  %vm127 = vcmp.eq.f32.partialorder %v126, 8.507059e+37
  %v128 = vand.u32 %v116, 2147483648
  %v129 = vor.u32 1.1754944e-38, %v128
  %v130 = vsel %vm127, %v129, %v125
  %v131 = vmul.f32 1.0, %v130
  %v132 = vmul.f32 %v131, 3.0
  %v133 = vadd.f32 %v132, %v99
  %v134 = vmul.f32 %v133, 0.25
  %v135 = vlaneseq
  %v136 = vand.u32 %v135, 127
  %vm137 = vcmp.eq.s32.totalorder %v136, 0
  %v138 = vsel %vm137, %v134, 0.0
  %vm139 = vcmp.eq.s32.totalorder %v136, 1
  %v140 = vsel %vm139, %v131, 0.0
  %v141 = vadd.f32 %v138, %v140
  %vm142 = vcmp.eq.s32.totalorder %v136, 2
  %v143 = vsel %vm142, %v99, 0.0
  %v144 = vadd.f32 %v141, %v143
  %145 = vst [vmem:[%s5] sm:$0xff] %v144
  // Predicated region
  $region22: #{ensemble_forward.1} parent=0 // pred_check
    _
  $region23: #{ensemble_forward.1} parent=0 // pred_check_branch
    %147 = sbr.rel (0) target = $region25
  $region24: #{ensemble_forward.1} parent=0 // pred_region
    _
  $region25: #{ensemble_forward.1} parent=0 // pred_fallthru
    _
  // Predicated region
  $region26: #{ensemble_forward.1} parent=0 // pred_check
    _
  $region27: #{ensemble_forward.1} parent=0 // pred_check_branch
    %149 = sbr.rel (0) target = $region29
  $region28: #{ensemble_forward.1} parent=0 // pred_region
    _
  $region29: #{ensemble_forward.1} parent=0 // pred_fallthru
    _

</llo_original>
